<compile_context>
chip_gen: v7x
topology: tpu7x:2x2x1
jax: 0.10.0
libtpu: 0.0.40
codegen_flags: <defaults>
</compile_context>

<pallas_src>
import functools
from typing import NamedTuple

import numpy as np
import jax
import jax.numpy as jnp
from jax.experimental import pallas as pl
from jax.experimental.pallas import tpu as pltpu


def _round_up(n, m):
    return ((n + m - 1) // m) * m


def _vmem_capacity_bytes():
    """Physical VMEM of the attached TPU (64 MiB/TC on v7x, 128 MiB on v5e/v6e)."""
    try:
        return int(pltpu.get_tpu_info().vmem_capacity_bytes)
    except Exception:
        return 64 * 1024 * 1024  # conservative fallback: v7x per-TensorCore VMEM


def _vmem_need_bytes(tb, D, Dphi_pad, N_pad, io_itemsize, w_itemsize):
    """Rough per-kernel VMEM footprint for a batch tile of `tb` lanes."""
    lanes = max(_round_up(tb, 128), 128)
    io = max(int(io_itemsize), 4)
    # double-buffered grid I/O: xT in + xT out + phiT + two 1-row logpx blocks (8-sublane padded)
    grid_io = 2 * (2 * _round_up(D, 8) + Dphi_pad + 2 * 8) * lanes * io
    weights = 2 * N_pad * max(Dphi_pad, 128) * int(w_itemsize)  # resident (<= 2 buffers)
    scratch = N_pad * lanes * 4                                  # f32 conditioner staging
    return grid_io + weights + scratch


def _choose_batch_tile(B, need_fn, budget, max_tile=1024):
    """Batch lives on the lane axis: tiles must be multiples of 128 (or the full batch).
    Prefer the largest tile that fits the VMEM budget while keeping >= 2 grid steps
    (both v7x TensorCores busy); big tiles amortize the ~0.35us/step overhead on v5e/v6e."""
    if B <= 256:
        return B
    for tb in (max_tile, 512, 256, 128):
        if 2 * tb <= _round_up(B, 128) and need_fn(tb) <= budget:
            return tb
    return 128


class PackedFlowParams(NamedTuple):
    W_T: jax.Array        # (N_pad, Dphi_pad) rows = [ s_0 | t_0 | s_1 | t_1 | ... | dlog | pad ]
    nL: int
    D: int
    D_pad: int
    Dphi: int
    Dphi_pad: int
    N_pad: int
    dlog_row: int
    built_with_inds: bool


def pack_flow_params(Ws, Wt, bs, bt, inds=None, weight_dtype=None):
    """Pack per-layer conditioner weights into one (N_pad, Dphi_pad) matrix.

    Row layout (feature-on-sublane): [ s_0 | t_0 | s_1 | t_1 | ... | dlog | pad ], each
    per-layer block padded to D_pad = round_up(D, 8) sublanes.  The bias is folded into
    the last used weight column (matched by a ones-row appended to phi) and `dlog` is a
    precomputed row equal to the sum of every s row, so the log-det rides in the matmul.

    Call ONCE at parameter-setup time and reuse via apply_packed_flow: a canonical pack
    (inds=None) serves both forward and reverse (layer order is flipped by static slice
    order inside the kernel).  weight_dtype=jnp.bfloat16 halves weight DMA/VMEM.
    """
    Ws, Wt = jnp.asarray(Ws), jnp.asarray(Wt)
    bs, bt = jnp.asarray(bs), jnp.asarray(bt)
    L, Dphi, D = Ws.shape
    built_with_inds = inds is not None
    order = np.arange(L) if inds is None else np.asarray(list(inds), dtype=np.int64)
    nL = int(order.shape[0])
    D_pad = _round_up(max(D, 1), 8)
    Dphi_pad = _round_up(Dphi + 1, 8)
    if nL == 0:
        w = jnp.zeros((8, Dphi_pad), Ws.dtype if weight_dtype is None else weight_dtype)
        return PackedFlowParams(w, 0, D, D_pad, Dphi, Dphi_pad, 8, 0, built_with_inds)

    Ws_o, Wt_o, bs_o, bt_o = (a if inds is None else a[order] for a in (Ws, Wt, bs, bt))

    def _rows(W_o, b_o):                       # (nL,Dphi,D),(nL,D) -> (nL,D_pad,Dphi_pad)
        r = jnp.swapaxes(W_o, 1, 2)            # row d holds the weights producing feature d
        r = jnp.concatenate([r, b_o[..., None]], axis=-1)   # bias -> extra weight column
        return jnp.pad(r, ((0, 0), (0, D_pad - D), (0, Dphi_pad - Dphi - 1)))

    s_rows, t_rows = _rows(Ws_o, bs_o), _rows(Wt_o, bt_o)
    blocks = jnp.stack([s_rows, t_rows], axis=1).reshape(2 * nL * D_pad, Dphi_pad)
    dlog = jnp.sum(s_rows, axis=(0, 1))[None, :]   # log-det row: sum of all s rows
    W_T = jnp.concatenate([blocks, dlog], axis=0)
    N_pad = _round_up(W_T.shape[0], 8)
    if N_pad != W_T.shape[0]:
        W_T = jnp.pad(W_T, ((0, N_pad - W_T.shape[0]), (0, 0)))
    if weight_dtype is not None:
        W_T = W_T.astype(weight_dtype)
    return PackedFlowParams(W_T, nL, D, D_pad, Dphi, Dphi_pad, N_pad,
                            2 * nL * D_pad, built_with_inds)


def _flow_chain_kernel(x_ref, phi_ref, lp_ref, w_ref, xo_ref, lpo_ref, st_ref,
                       *, exec_offsets, D, dlog_row, reverse):
    # One MXU matmul produces every layer's conditioner output (bias folded in via the
    # ones-row of phi) plus the precomputed log-det row.  Staged in VMEM scratch so the
    # per-layer reads are bounded sublane slices instead of one huge live value.
    st_ref[...] = jnp.dot(w_ref[...], phi_ref[...], preferred_element_type=jnp.float32)

    # logpx update straight from the dlog row: lane-dense, no XLU reduction.
    lp = lp_ref[...].astype(jnp.float32)
    dlog = st_ref[dlog_row:dlog_row + 1, :]
    lpo_ref[...] = ((lp + dlog) if reverse else (lp - dlog)).astype(lpo_ref.dtype)

    # Sequential per-layer affine recurrence: fully unrolled VPU/EUP work over static,
    # 8-aligned sublane slices of the staged conditioner result.
    x = x_ref[...].astype(jnp.float32)
    for off_s, off_t in exec_offsets:
        s = st_ref[off_s:off_s + D, :]
        t = st_ref[off_t:off_t + D, :]
        if reverse:
            x = (x - t) * jnp.exp(-s)
        else:
            x = x * jnp.exp(s) + t
    xo_ref[...] = x.astype(xo_ref.dtype)


def apply_packed_flow(x, phi, packed, logpx=None, reverse=False, batch_tile=None):
    """Run the packed flow chain on a batch (ExtendedSequentialFlow.forward semantics)."""
    B, D = x.shape
    assert D == packed.D, "x feature dim does not match packed params"
    return_logpx = logpx is not None
    if packed.nL == 0:                     # empty chain: identity, dtypes untouched
        return (x, logpx) if return_logpx else x

    Dphi, Dphi_pad = packed.Dphi, packed.Dphi_pad
    D_pad, N_pad, nL = packed.D_pad, packed.N_pad, packed.nL
    assert phi.shape == (B, Dphi)

    cap = _vmem_capacity_bytes()
    budget = int(0.70 * cap)
    io_bytes = jnp.dtype(x.dtype).itemsize
    w_bytes = jnp.dtype(packed.W_T.dtype).itemsize
    need_fn = lambda t: _vmem_need_bytes(t, D, Dphi_pad, N_pad, io_bytes, w_bytes)

    if batch_tile is None:
        tb = _choose_batch_tile(B, need_fn, budget)
    else:
        tb = int(batch_tile)
        if tb < B and tb % 128 != 0:       # lane-axis tiles must be 128-aligned
            tb = _round_up(tb, 128)
    if tb >= B:
        tb, B_pad = B, B
    else:
        B_pad = _round_up(B, tb)           # pad, never truncate, non-dividing batches
    grid = (B_pad // tb,)
    vmem_limit = int(min(int(0.9 * cap), max(32 << 20, need_fn(tb) + (8 << 20))))

    # Feature-on-sublane / batch-on-lane layout (lane-dense x & logpx, aligned slices).
    xT = jnp.transpose(x)                                       # (D, B)
    phiT = jnp.concatenate(
        [jnp.transpose(phi),
         jnp.ones((1, B), phi.dtype),                            # folds biases into the matmul
         jnp.zeros((Dphi_pad - Dphi - 1, B), phi.dtype)], axis=0)
    if logpx is None:
        lp_row = jnp.zeros((1, B), jnp.float32)
    else:
        lp_row = jnp.reshape(logpx, (1, B)).astype(jnp.float32)
    if B_pad != B:
        pad = ((0, 0), (0, B_pad - B))
        xT, phiT, lp_row = (jnp.pad(a, pad) for a in (xT, phiT, lp_row))

    exec_blocks = range(nL)
    if reverse and not packed.built_with_inds:    # module default: reversed layer order
        exec_blocks = reversed(range(nL))
    exec_offsets = tuple((2 * p * D_pad, 2 * p * D_pad + D_pad) for p in exec_blocks)

    kernel = functools.partial(_flow_chain_kernel, exec_offsets=exec_offsets, D=D,
                               dlog_row=packed.dlog_row, reverse=bool(reverse))

    def _call(single_buffer_weights):
        if single_buffer_weights:
            # Resident block (constant index_map): no need to double-buffer it.
            w_spec = pl.BlockSpec((N_pad, Dphi_pad), lambda i: (0, 0),
                                  pipeline_mode=pl.Buffered(1))
        else:
            w_spec = pl.BlockSpec((N_pad, Dphi_pad), lambda i: (0, 0))
        return pl.pallas_call(
            kernel,
            out_shape=(jax.ShapeDtypeStruct((D, B_pad), x.dtype),
                       jax.ShapeDtypeStruct((1, B_pad), jnp.float32)),
            grid=grid,
            in_specs=[
                pl.BlockSpec((D, tb), lambda i: (0, i)),          # x tile (transposed)
                pl.BlockSpec((Dphi_pad, tb), lambda i: (0, i)),   # phi tile (+ ones row)
                pl.BlockSpec((1, tb), lambda i: (0, i)),          # logpx row (lane dense)
                w_spec,                                           # packed weights, resident
            ],
            out_specs=(pl.BlockSpec((D, tb), lambda i: (0, i)),
                       pl.BlockSpec((1, tb), lambda i: (0, i))),
            scratch_shapes=[pltpu.VMEM((N_pad, tb), jnp.float32)],
            compiler_params=pltpu.CompilerParams(
                dimension_semantics=("parallel",),                # batch tiles independent
                vmem_limit_bytes=vmem_limit),
        )(xT, phiT, lp_row, packed.W_T)

    try:
        xoT, lpo = _call(True)
    except Exception:
        # pl.Buffered(1) not supported by this jax/libtpu build: fall back to defaults.
        xoT, lpo = _call(False)

    x_out = jnp.transpose(xoT[:, :B])
    if not return_logpx:
        return x_out
    lp_out = jnp.reshape(lpo[0, :B], jnp.shape(logpx)).astype(logpx.dtype)
    return x_out, lp_out


def extended_sequential_flow(x, phi, Ws, Wt, bs, bt, logpx=None, reverse=False,
                             inds=None, batch_tile=None, weight_dtype=None):
    """One-shot convenience wrapper (packs on every call).  For repeated evaluation,
    call pack_flow_params(...) once at parameter-setup time and reuse it with
    apply_packed_flow(...)."""
    packed = pack_flow_params(Ws, Wt, bs, bt, inds=inds, weight_dtype=weight_dtype)
    return apply_packed_flow(x, phi, packed, logpx=logpx, reverse=reverse,
                             batch_tile=batch_tile)


def _reference(x, phi, Ws, Wt, bs, bt, logpx, reverse=False, inds=None):
    """Pure-JAX reference mirroring the PyTorch container semantics."""
    L = Ws.shape[0]
    if inds is None:
        inds = range(L - 1, -1, -1) if reverse else range(L)
    x = x.astype(jnp.float32)
    logpx = logpx.astype(jnp.float32)
    for i in inds:
        s = phi.astype(jnp.float32) @ Ws[i] + bs[i]
        t = phi.astype(jnp.float32) @ Wt[i] + bt[i]
        if not reverse:
            x = x * jnp.exp(s) + t
            logpx = logpx - jnp.sum(s, axis=-1, keepdims=True)
        else:
            x = (x - t) * jnp.exp(-s)
            logpx = logpx + jnp.sum(s, axis=-1, keepdims=True)
    return x, logpx


if __name__ == "__main__":
    key = jax.random.PRNGKey(0)
    B, D, Dphi, L = 8, 32, 16, 3   # small shapes: batch=8, hidden=32, cond=16, 3 layers
    kx, kphi, kws, kwt, kbs, kbt, kx2, kphi2 = jax.random.split(key, 8)

    x = jax.random.normal(kx, (B, D), jnp.float32)
    phi = jax.random.normal(kphi, (B, Dphi), jnp.float32)
    logpx = jnp.zeros((B, 1), jnp.float32)
    Ws = 0.05 * jax.random.normal(kws, (L, Dphi, D), jnp.float32)
    Wt = 0.05 * jax.random.normal(kwt, (L, Dphi, D), jnp.float32)
    bs = 0.01 * jax.random.normal(kbs, (L, D), jnp.float32)
    bt = 0.01 * jax.random.normal(kbt, (L, D), jnp.float32)

    # Pack ONCE at parameter-setup time; the same canonical pack serves forward,
    # forward-without-logpx and reverse.
    packed = pack_flow_params(Ws, Wt, bs, bt)

    y, logpy = apply_packed_flow(x, phi, packed, logpx=logpx, reverse=False)
    y_only = apply_packed_flow(x, phi, packed, reverse=False)                 # logpx=None branch
    x_rec, logpx_rec = apply_packed_flow(y, phi, packed, logpx=logpy, reverse=True)
    jax.block_until_ready((y, logpy, y_only, x_rec, logpx_rec))

    # Explicit layer-order path (module's `inds` argument).
    custom = [2, 0, 1]
    y_c, logpy_c = extended_sequential_flow(x, phi, Ws, Wt, bs, bt,
                                            logpx=logpx, reverse=False, inds=custom)
    # bf16-packed weights (halved weight DMA/VMEM); the recurrence stays f32.
    y_bf, logpy_bf = extended_sequential_flow(x, phi, Ws, Wt, bs, bt, logpx=logpx,
                                              reverse=False, weight_dtype=jnp.bfloat16)
    # Larger batch that is not a multiple of the lane tile: exercises batch padding
    # and the multi-step "parallel" grid.
    B2 = 300
    x2 = jax.random.normal(kx2, (B2, D), jnp.float32)
    phi2 = jax.random.normal(kphi2, (B2, Dphi), jnp.float32)
    logpx2 = jnp.zeros((B2, 1), jnp.float32)
    y2, logpy2 = apply_packed_flow(x2, phi2, packed, logpx=logpx2, reverse=False)
    jax.block_until_ready((y_c, logpy_c, y_bf, logpy_bf, y2, logpy2))

    # Checks against the pure-JAX reference + invertibility.
    y_ref, logpy_ref = _reference(x, phi, Ws, Wt, bs, bt, logpx, reverse=False)
    yc_ref, logpyc_ref = _reference(x, phi, Ws, Wt, bs, bt, logpx, reverse=False, inds=custom)
    y2_ref, logpy2_ref = _reference(x2, phi2, Ws, Wt, bs, bt, logpx2, reverse=False)

    np.testing.assert_allclose(np.asarray(y), np.asarray(y_ref), rtol=1e-5, atol=1e-5)
    np.testing.assert_allclose(np.asarray(logpy), np.asarray(logpy_ref), rtol=1e-5, atol=1e-4)
    np.testing.assert_allclose(np.asarray(y_only), np.asarray(y_ref), rtol=1e-5, atol=1e-5)
    np.testing.assert_allclose(np.asarray(x_rec), np.asarray(x), rtol=1e-4, atol=1e-4)
    np.testing.assert_allclose(np.asarray(logpx_rec), np.asarray(logpx), rtol=1e-4, atol=1e-4)
    np.testing.assert_allclose(np.asarray(y_c), np.asarray(yc_ref), rtol=1e-5, atol=1e-5)
    np.testing.assert_allclose(np.asarray(logpy_c), np.asarray(logpyc_ref), rtol=1e-5, atol=1e-4)
    np.testing.assert_allclose(np.asarray(y2), np.asarray(y2_ref), rtol=1e-5, atol=1e-5)
    np.testing.assert_allclose(np.asarray(logpy2), np.asarray(logpy2_ref), rtol=1e-5, atol=1e-4)
    # bf16 weights: loose tolerance (weight rounding only; recurrence stays f32).
    np.testing.assert_allclose(np.asarray(y_bf), np.asarray(y_ref), rtol=1e-1, atol=1e-1)
    np.testing.assert_allclose(np.asarray(logpy_bf), np.asarray(logpy_ref), rtol=1e-1, atol=1e-1)

    print("KERNEL_OK")
</pallas_src>

<mosaic_0001>
module attributes {stable_mosaic.version = 11 : i64} {
  func.func @_flow_chain_kernel(%arg0: i32, %arg1: memref<32x8xf32, #tpu.memory_space<vmem>>, %arg2: memref<24x8xf32, #tpu.memory_space<vmem>>, %arg3: memref<1x8xf32, #tpu.memory_space<vmem>>, %arg4: memref<200x24xf32, #tpu.memory_space<vmem>>, %arg5: memref<32x8xf32, #tpu.memory_space<vmem>>, %arg6: memref<1x8xf32, #tpu.memory_space<vmem>>, %arg7: memref<200x8xf32, #tpu.memory_space<vmem>>) attributes {dimension_semantics = [#tpu.dimension_semantics<parallel>], iteration_bounds = array<i64: 1>, scalar_prefetch = 0 : i64, scratch_operands = 1 : i64, tpu.core_type = #tpu.core_type<tc>, window_params = [{transform_indices = @transform_0, window_bounds = array<i64: 32, 8>}, {transform_indices = @transform_1, window_bounds = array<i64: 24, 8>}, {transform_indices = @transform_2, window_bounds = array<i64: 1, 8>}, {pipeline_mode = #tpu.pipeline_mode<synchronous>, transform_indices = @transform_3, window_bounds = array<i64: 200, 24>}, {transform_indices = @transform_4, window_bounds = array<i64: 32, 8>}, {transform_indices = @transform_5, window_bounds = array<i64: 1, 8>}]} {
    %c0 = arith.constant 0 : index
    %c0_0 = arith.constant 0 : index
    %0 = vector.load %arg4[%c0, %c0_0] : memref<200x24xf32, #tpu.memory_space<vmem>>, vector<200x24xf32>
    %c0_1 = arith.constant 0 : index
    %c0_2 = arith.constant 0 : index
    %1 = vector.load %arg2[%c0_1, %c0_2] : memref<24x8xf32, #tpu.memory_space<vmem>>, vector<24x8xf32>
    %cst = arith.constant dense<0.000000e+00> : vector<200x8xf32>
    %2 = tpu.matmul %0, %1, %cst {dimension_numbers = #tpu.dot_dimension_numbers<[1], [0], [0], [1], [0, 0, 1, 1], [], []>} : vector<200x24xf32>, vector<24x8xf32>, vector<200x8xf32> -> vector<200x8xf32>
    %c0_3 = arith.constant 0 : index
    %c0_4 = arith.constant 0 : index
    %3 = vector.load %arg7[%c0_3, %c0_4] : memref<200x8xf32, #tpu.memory_space<vmem>>, vector<200x8xf32>
    tpu.vector_store %arg7[%c0_3, %c0_4], %2 {strides = array<i32>} : memref<200x8xf32, #tpu.memory_space<vmem>>, vector<200x8xf32>,
    %c0_5 = arith.constant 0 : index
    %c0_6 = arith.constant 0 : index
    %4 = vector.load %arg3[%c0_5, %c0_6] : memref<1x8xf32, #tpu.memory_space<vmem>>, vector<1x8xf32>
    %c192 = arith.constant 192 : index
    %c0_7 = arith.constant 0 : index
    %5 = vector.load %arg7[%c192, %c0_7] : memref<200x8xf32, #tpu.memory_space<vmem>>, vector<1x8xf32>
    %6 = arith.subf %4, %5 : vector<1x8xf32>
    %c0_8 = arith.constant 0 : index
    %c0_9 = arith.constant 0 : index
    %7 = vector.load %arg6[%c0_8, %c0_9] : memref<1x8xf32, #tpu.memory_space<vmem>>, vector<1x8xf32>
    tpu.vector_store %arg6[%c0_8, %c0_9], %6 {strides = array<i32>} : memref<1x8xf32, #tpu.memory_space<vmem>>, vector<1x8xf32>,
    %c0_10 = arith.constant 0 : index
    %c0_11 = arith.constant 0 : index
    %8 = vector.load %arg1[%c0_10, %c0_11] : memref<32x8xf32, #tpu.memory_space<vmem>>, vector<32x8xf32>
    %c0_12 = arith.constant 0 : index
    %c0_13 = arith.constant 0 : index
    %9 = vector.load %arg7[%c0_12, %c0_13] : memref<200x8xf32, #tpu.memory_space<vmem>>, vector<32x8xf32>
    %c32 = arith.constant 32 : index
    %c0_14 = arith.constant 0 : index
    %10 = vector.load %arg7[%c32, %c0_14] : memref<200x8xf32, #tpu.memory_space<vmem>>, vector<32x8xf32>
    %11 = math.exp %9 : vector<32x8xf32>
    %12 = arith.mulf %8, %11 : vector<32x8xf32>
    %13 = arith.addf %12, %10 : vector<32x8xf32>
    %c64 = arith.constant 64 : index
    %c0_15 = arith.constant 0 : index
    %14 = vector.load %arg7[%c64, %c0_15] : memref<200x8xf32, #tpu.memory_space<vmem>>, vector<32x8xf32>
    %c96 = arith.constant 96 : index
    %c0_16 = arith.constant 0 : index
    %15 = vector.load %arg7[%c96, %c0_16] : memref<200x8xf32, #tpu.memory_space<vmem>>, vector<32x8xf32>
    %16 = math.exp %14 : vector<32x8xf32>
    %17 = arith.mulf %13, %16 : vector<32x8xf32>
    %18 = arith.addf %17, %15 : vector<32x8xf32>
    %c128 = arith.constant 128 : index
    %c0_17 = arith.constant 0 : index
    %19 = vector.load %arg7[%c128, %c0_17] : memref<200x8xf32, #tpu.memory_space<vmem>>, vector<32x8xf32>
    %c160 = arith.constant 160 : index
    %c0_18 = arith.constant 0 : index
    %20 = vector.load %arg7[%c160, %c0_18] : memref<200x8xf32, #tpu.memory_space<vmem>>, vector<32x8xf32>
    %21 = math.exp %19 : vector<32x8xf32>
    %22 = arith.mulf %18, %21 : vector<32x8xf32>
    %23 = arith.addf %22, %20 : vector<32x8xf32>
    %c0_19 = arith.constant 0 : index
    %c0_20 = arith.constant 0 : index
    %24 = vector.load %arg5[%c0_19, %c0_20] : memref<32x8xf32, #tpu.memory_space<vmem>>, vector<32x8xf32>
    tpu.vector_store %arg5[%c0_19, %c0_20], %23 {strides = array<i32>} : memref<32x8xf32, #tpu.memory_space<vmem>>, vector<32x8xf32>,
    return
  }
  func.func @transform_0(%arg0: i32) -> (i32, i32) {
    %c0_i32 = arith.constant 0 : i32
    %c0_i32_0 = arith.constant 0 : i32
    return %c0_i32, %arg0 : i32, i32
  }
  func.func @transform_1(%arg0: i32) -> (i32, i32) {
    %c0_i32 = arith.constant 0 : i32
    %c0_i32_0 = arith.constant 0 : i32
    return %c0_i32, %arg0 : i32, i32
  }
  func.func @transform_2(%arg0: i32) -> (i32, i32) {
    %c0_i32 = arith.constant 0 : i32
    %c0_i32_0 = arith.constant 0 : i32
    return %c0_i32, %arg0 : i32, i32
  }
  func.func @transform_3(%arg0: i32) -> (i32, i32) {
    %c0_i32 = arith.constant 0 : i32
    %c0_i32_0 = arith.constant 0 : i32
    %c0_i32_1 = arith.constant 0 : i32
    return %c0_i32, %c0_i32_0 : i32, i32
  }
  func.func @transform_4(%arg0: i32) -> (i32, i32) {
    %c0_i32 = arith.constant 0 : i32
    %c0_i32_0 = arith.constant 0 : i32
    return %c0_i32, %arg0 : i32, i32
  }
  func.func @transform_5(%arg0: i32) -> (i32, i32) {
    %c0_i32 = arith.constant 0 : i32
    %c0_i32_0 = arith.constant 0 : i32
    return %c0_i32, %arg0 : i32, i32
  }
}

module attributes {stable_mosaic.version = 11 : i64} {
  func.func @_flow_chain_kernel(%arg0: i32, %arg1: memref<32x8xf32, #tpu.memory_space<vmem>>, %arg2: memref<24x8xf32, #tpu.memory_space<vmem>>, %arg3: memref<1x8xf32, #tpu.memory_space<vmem>>, %arg4: memref<200x24xf32, #tpu.memory_space<vmem>>, %arg5: memref<32x8xf32, #tpu.memory_space<vmem>>, %arg6: memref<1x8xf32, #tpu.memory_space<vmem>>, %arg7: memref<200x8xf32, #tpu.memory_space<vmem>>) attributes {dimension_semantics = [#tpu.dimension_semantics<parallel>], iteration_bounds = array<i64: 1>, scalar_prefetch = 0 : i64, scratch_operands = 1 : i64, tpu.core_type = #tpu.core_type<tc>, window_params = [{transform_indices = @transform_0, window_bounds = array<i64: 32, 8>}, {transform_indices = @transform_1, window_bounds = array<i64: 24, 8>}, {transform_indices = @transform_2, window_bounds = array<i64: 1, 8>}, {pipeline_mode = #tpu.pipeline_mode<synchronous>, transform_indices = @transform_3, window_bounds = array<i64: 200, 24>}, {transform_indices = @transform_4, window_bounds = array<i64: 32, 8>}, {transform_indices = @transform_5, window_bounds = array<i64: 1, 8>}]} {
    %c0 = arith.constant 0 : index
    %c0_0 = arith.constant 0 : index
    %0 = vector.load %arg4[%c0, %c0_0] : memref<200x24xf32, #tpu.memory_space<vmem>>, vector<200x24xf32>
    %c0_1 = arith.constant 0 : index
    %c0_2 = arith.constant 0 : index
    %1 = vector.load %arg2[%c0_1, %c0_2] : memref<24x8xf32, #tpu.memory_space<vmem>>, vector<24x8xf32>
    %cst = arith.constant dense<0.000000e+00> : vector<200x8xf32>
    %2 = tpu.matmul %0, %1, %cst {dimension_numbers = #tpu.dot_dimension_numbers<[1], [0], [0], [1], [0, 0, 1, 1], [], []>} : vector<200x24xf32>, vector<24x8xf32>, vector<200x8xf32> -> vector<200x8xf32>
    %c0_3 = arith.constant 0 : index
    %c0_4 = arith.constant 0 : index
    %3 = vector.load %arg7[%c0_3, %c0_4] : memref<200x8xf32, #tpu.memory_space<vmem>>, vector<200x8xf32>
    tpu.vector_store %arg7[%c0_3, %c0_4], %2 {strides = array<i32>} : memref<200x8xf32, #tpu.memory_space<vmem>>, vector<200x8xf32>,
    %c0_5 = arith.constant 0 : index
    %c0_6 = arith.constant 0 : index
    %4 = vector.load %arg3[%c0_5, %c0_6] : memref<1x8xf32, #tpu.memory_space<vmem>>, vector<1x8xf32>
    %c192 = arith.constant 192 : index
    %c0_7 = arith.constant 0 : index
    %5 = vector.load %arg7[%c192, %c0_7] : memref<200x8xf32, #tpu.memory_space<vmem>>, vector<1x8xf32>
    %6 = arith.subf %4, %5 : vector<1x8xf32>
    %c0_8 = arith.constant 0 : index
    %c0_9 = arith.constant 0 : index
    %7 = vector.load %arg6[%c0_8, %c0_9] : memref<1x8xf32, #tpu.memory_space<vmem>>, vector<1x8xf32>
    tpu.vector_store %arg6[%c0_8, %c0_9], %6 {strides = array<i32>} : memref<1x8xf32, #tpu.memory_space<vmem>>, vector<1x8xf32>,
    %c0_10 = arith.constant 0 : index
    %c0_11 = arith.constant 0 : index
    %8 = vector.load %arg1[%c0_10, %c0_11] : memref<32x8xf32, #tpu.memory_space<vmem>>, vector<32x8xf32>
    %c0_12 = arith.constant 0 : index
    %c0_13 = arith.constant 0 : index
    %9 = vector.load %arg7[%c0_12, %c0_13] : memref<200x8xf32, #tpu.memory_space<vmem>>, vector<32x8xf32>
    %c32 = arith.constant 32 : index
    %c0_14 = arith.constant 0 : index
    %10 = vector.load %arg7[%c32, %c0_14] : memref<200x8xf32, #tpu.memory_space<vmem>>, vector<32x8xf32>
    %11 = math.exp %9 : vector<32x8xf32>
    %12 = arith.mulf %8, %11 : vector<32x8xf32>
    %13 = arith.addf %12, %10 : vector<32x8xf32>
    %c64 = arith.constant 64 : index
    %c0_15 = arith.constant 0 : index
    %14 = vector.load %arg7[%c64, %c0_15] : memref<200x8xf32, #tpu.memory_space<vmem>>, vector<32x8xf32>
    %c96 = arith.constant 96 : index
    %c0_16 = arith.constant 0 : index
    %15 = vector.load %arg7[%c96, %c0_16] : memref<200x8xf32, #tpu.memory_space<vmem>>, vector<32x8xf32>
    %16 = math.exp %14 : vector<32x8xf32>
    %17 = arith.mulf %13, %16 : vector<32x8xf32>
    %18 = arith.addf %17, %15 : vector<32x8xf32>
    %c128 = arith.constant 128 : index
    %c0_17 = arith.constant 0 : index
    %19 = vector.load %arg7[%c128, %c0_17] : memref<200x8xf32, #tpu.memory_space<vmem>>, vector<32x8xf32>
    %c160 = arith.constant 160 : index
    %c0_18 = arith.constant 0 : index
    %20 = vector.load %arg7[%c160, %c0_18] : memref<200x8xf32, #tpu.memory_space<vmem>>, vector<32x8xf32>
    %21 = math.exp %19 : vector<32x8xf32>
    %22 = arith.mulf %18, %21 : vector<32x8xf32>
    %23 = arith.addf %22, %20 : vector<32x8xf32>
    %c0_19 = arith.constant 0 : index
    %c0_20 = arith.constant 0 : index
    %24 = vector.load %arg5[%c0_19, %c0_20] : memref<32x8xf32, #tpu.memory_space<vmem>>, vector<32x8xf32>
    tpu.vector_store %arg5[%c0_19, %c0_20], %23 {strides = array<i32>} : memref<32x8xf32, #tpu.memory_space<vmem>>, vector<32x8xf32>,
    return
  }
  func.func @transform_0(%arg0: i32) -> (i32, i32) {
    %c0_i32 = arith.constant 0 : i32
    %c0_i32_0 = arith.constant 0 : i32
    return %c0_i32, %arg0 : i32, i32
  }
  func.func @transform_1(%arg0: i32) -> (i32, i32) {
    %c0_i32 = arith.constant 0 : i32
    %c0_i32_0 = arith.constant 0 : i32
    return %c0_i32, %arg0 : i32, i32
  }
  func.func @transform_2(%arg0: i32) -> (i32, i32) {
    %c0_i32 = arith.constant 0 : i32
    %c0_i32_0 = arith.constant 0 : i32
    return %c0_i32, %arg0 : i32, i32
  }
  func.func @transform_3(%arg0: i32) -> (i32, i32) {
    %c0_i32 = arith.constant 0 : i32
    %c0_i32_0 = arith.constant 0 : i32
    %c0_i32_1 = arith.constant 0 : i32
    return %c0_i32, %c0_i32_0 : i32, i32
  }
  func.func @transform_4(%arg0: i32) -> (i32, i32) {
    %c0_i32 = arith.constant 0 : i32
    %c0_i32_0 = arith.constant 0 : i32
    return %c0_i32, %arg0 : i32, i32
  }
  func.func @transform_5(%arg0: i32) -> (i32, i32) {
    %c0_i32 = arith.constant 0 : i32
    %c0_i32_0 = arith.constant 0 : i32
    return %c0_i32, %arg0 : i32, i32
  }
}

</mosaic_0001>

<llo_original>
// kernel: tpu_custom_call.1
$region0: #{tpu_custom_call.1}
  #allocation0 [shape = 'u32[]', space=smem, size = 0x4, offset = 0x4, fixed_abs, tag = 'smem constant byte address 0x4 - core index']
  #allocation1 [shape = 'u32[144,128]{1,0:T(1,128)}', space=vmem, size = 0x12000, scoped, tag = 'internal scratch']
  #allocation2 [shape = 'f32[200,8]{1,0:T(8,128)}', space=vmem, size = 0x19000, scoped, tag = 'scratch operand']
  %s0 = inlined_call_operand.vmem [shape: f32[32,8], index: 0, kind: input, shape index: {}]
  %s1 = inlined_call_operand.vmem [shape: f32[24,8], index: 1, kind: input, shape index: {}]
  %s2 = inlined_call_operand.vmem [shape: f32[1,8], index: 2, kind: input, shape index: {}]
  %s3 = inlined_call_operand.vmem [shape: f32[200,24], index: 3, kind: input, shape index: {}]
  %s4 = inlined_call_operand.vmem [shape: f32[32,8], index: 4, kind: output, shape index: {0}]
  %s5 = inlined_call_operand.hbm [shape: f32[1,8], index: 5, kind: output, shape index: {1}]
  %6 = xla_tuple %s4, %s5
  %s7 = sld [smem:[#allocation0]]
  $region34: #{tpu_custom_call.1} parent=0
    _
  %s9 = ssub.s32 1, %s7
  %s10 = scalar_select 0, %s9, %s7
  $region1: #{tpu_custom_call.1} parent=0
    #allocation3 [shape = 'u8[512]{0}', space=vmem, size = 0x400, scoped, tag = 'output window, operand 1, single buffered']
    #allocation4 [shape = 's32[1]{0}', space=sflag, size = 0x4, scoped, tag = 'scoped memory for tpu_custom_call.1']
    %11 = vsyncpa [#allocation4], 0
    // Predicated region
    $region2: #{tpu_custom_call.1} parent=1 // pred_check
      _
    $region3: #{tpu_custom_call.1} parent=1 // pred_check_branch
      %13 = sbr.rel (0) target = $region5
    $region4: #{tpu_custom_call.1} parent=1 // pred_region
      _
    $region5: #{tpu_custom_call.1} parent=1 // pred_fallthru
      _
    // Predicated region
    $region6: #{tpu_custom_call.1} parent=1 // pred_check
      _
    $region7: #{tpu_custom_call.1} parent=1 // pred_check_branch
      %15 = sbr.rel (0) target = $region9
    $region8: #{tpu_custom_call.1} parent=1 // pred_region
      _
    $region9: #{tpu_custom_call.1} parent=1 // pred_fallthru
      _
    // Predicated region
    $region10: #{tpu_custom_call.1} parent=1 // pred_check
      _
    $region11: #{tpu_custom_call.1} parent=1 // pred_check_branch
      %17 = sbr.rel (0) target = $region13
    $region12: #{tpu_custom_call.1} parent=1 // pred_region
      _
    $region13: #{tpu_custom_call.1} parent=1 // pred_fallthru
      _
    // Predicated region
    $region14: #{tpu_custom_call.1} parent=1 // pred_check
      _
    $region15: #{tpu_custom_call.1} parent=1 // pred_check_branch
      %19 = sbr.rel (0) target = $region17
    $region16: #{tpu_custom_call.1} parent=1 // pred_region
      _
    $region17: #{tpu_custom_call.1} parent=1 // pred_fallthru
      _
    %v20 = vld [vmem:[%s3] sm:$0xff]
    %v21 = vld [vmem:[%s3 + $0x8] sm:$0xff]
    %v22 = vld [vmem:[%s3 + $0x10] sm:$0xff]
    %v23 = vld [vmem:[%s3 + $0x18] sm:$0xff]
    %v24 = vld [vmem:[%s3 + $0x20] sm:$0xff]
    %v25 = vld [vmem:[%s3 + $0x28] sm:$0xff]
    %v26 = vld [vmem:[%s3 + $0x30] sm:$0xff]
    %v27 = vld [vmem:[%s3 + $0x38] sm:$0xff]
    %v28 = vld [vmem:[%s3 + $0x40] sm:$0xff]
    %v29 = vld [vmem:[%s3 + $0x48] sm:$0xff]
    %v30 = vld [vmem:[%s3 + $0x50] sm:$0xff]
    %v31 = vld [vmem:[%s3 + $0x58] sm:$0xff]
    %v32 = vld [vmem:[%s3 + $0x60] sm:$0xff]
    %v33 = vld [vmem:[%s3 + $0x68] sm:$0xff]
    %v34 = vld [vmem:[%s3 + $0x70] sm:$0xff]
    %v35 = vld [vmem:[%s3 + $0x78] sm:$0xff]
    %v36 = vld [vmem:[%s3 + $0x80] sm:$0xff]
    %v37 = vld [vmem:[%s3 + $0x88] sm:$0xff]
    %v38 = vld [vmem:[%s3 + $0x90] sm:$0xff]
    %v39 = vld [vmem:[%s3 + $0x98] sm:$0xff]
    %v40 = vld [vmem:[%s3 + $0xa0] sm:$0xff]
    %v41 = vld [vmem:[%s3 + $0xa8] sm:$0xff]
    %v42 = vld [vmem:[%s3 + $0xb0] sm:$0xff]
    %v43 = vld [vmem:[%s3 + $0xb8] sm:$0xff]
    %v44 = vld [vmem:[%s3 + $0xc0] sm:$0xff]
    %v45 = vld [vmem:[%s1] sm:$0xff]
    %v46 = vld [vmem:[%s1 + $0x8] sm:$0xff]
    %v47 = vld [vmem:[%s1 + $0x10] sm:$0xff]
    %vm48 = vcmask 195584
    %v50 = vsel %vm48, %v20, 0
    %v53 = vsel %vm48, %v21, 0
    %v56 = vsel %vm48, %v22, 0
    %v59 = vsel %vm48, %v23, 0
    %v62 = vsel %vm48, %v24, 0
    %v65 = vsel %vm48, %v25, 0
    %v68 = vsel %vm48, %v26, 0
    %v71 = vsel %vm48, %v27, 0
    %v74 = vsel %vm48, %v28, 0
    %v77 = vsel %vm48, %v29, 0
    %v80 = vsel %vm48, %v30, 0
    %v83 = vsel %vm48, %v31, 0
    %v86 = vsel %vm48, %v32, 0
    %v89 = vsel %vm48, %v33, 0
    %v92 = vsel %vm48, %v34, 0
    %v95 = vsel %vm48, %v35, 0
    %v98 = vsel %vm48, %v36, 0
    %v101 = vsel %vm48, %v37, 0
    %v104 = vsel %vm48, %v38, 0
    %v107 = vsel %vm48, %v39, 0
    %v110 = vsel %vm48, %v40, 0
    %v113 = vsel %vm48, %v41, 0
    %v116 = vsel %vm48, %v42, 0
    %v119 = vsel %vm48, %v43, 0
    %v122 = vsel %vm48, %v44, 0
    %124 = vmatprep.subr.mxu0 0.0
    %125 = vmatpush1.msra.mxu0 %v45
    %126 = vmatprep.subr.mxu0 0.0
    %127 = vmatpush1.msra.mxu0 %v46
    %128 = vmatprep.subr.mxu0 0.0
    %129 = vmatpush1.msra.mxu0 %v47
    %130 = vmatprep.subr.mxu0 0.0
    %131 = vmatpush1.msra.mxu0 0.0
    %132 = vmatprep.subr.mxu0 0.0
    %133 = vmatpush1.msra.mxu0 0.0
    %134 = vmatprep.subr.mxu0 0.0
    %135 = vmatpush1.msra.mxu0 0.0
    %136 = vmatprep.subr.mxu0 0.0
    %137 = vmatpush1.msra.mxu0 0.0
    %138 = vmatprep.subr.mxu0 0.0
    %139 = vmatpush1.msra.mxu0 0.0
    %140 = vmatprep.subr.mxu0 0.0
    %141 = vmatpush1.msra.mxu0 0.0
    %142 = vmatprep.subr.mxu0 0.0
    %143 = vmatpush1.msra.mxu0 0.0
    %144 = vmatprep.subr.mxu0 0.0
    %145 = vmatpush1.msra.mxu0 0.0
    %146 = vmatprep.subr.mxu0 0.0
    %147 = vmatpush1.msra.mxu0 0.0
    %148 = vmatprep.subr.mxu0 0.0
    %149 = vmatpush1.msra.mxu0 0.0
    %150 = vmatprep.subr.mxu0 0.0
    %151 = vmatpush1.msra.mxu0 0.0
    %152 = vmatprep.subr.mxu0 0.0
    %153 = vmatpush1.msra.mxu0 0.0
    %154 = vmatprep.subr.mxu0 0.0
    %155 = vmatpush1.msra.mxu0 0.0
    %156 = vmatprep.subr.mxu0 0.0
    %157 = vmatpush1.msra.mxu0 0.0
    %158 = vmatprep.subr.mxu0 0.0
    %159 = vmatpush1.msra.mxu0 0.0
    %160 = vmatprep.subr.mxu0 0.0
    %161 = vmatpush1.msra.mxu0 0.0
    %162 = vmatprep.subr.mxu0 0.0
    %163 = vmatpush1.msra.mxu0 0.0
    %164 = vmatprep.subr.mxu0 0.0
    %165 = vmatpush1.msra.mxu0 0.0
    %166 = vmatprep.subr.mxu0 0.0
    %167 = vmatpush1.msra.mxu0 0.0
    %168 = vmatprep.subr.mxu0 0.0
    %169 = vmatpush1.msra.mxu0 0.0
    %170 = vmatprep.subr.mxu0 0.0
    %171 = vmatpush1.msra.mxu0 0.0
    %172 = vmatprep.subr.mxu0 0.0
    %173 = vmatpush1.msra.mxu0 0.0
    %174 = vmatprep.subr.mxu0 0.0
    %175 = vmatpush1.msra.mxu0 0.0
    %176 = vmatprep.subr.mxu0 0.0
    %177 = vmatpush1.msra.mxu0 0.0
    %178 = vmatprep.subr.mxu0 0.0
    %179 = vmatpush1.msra.mxu0 0.0
    %180 = vmatprep.subr.mxu0 0.0
    %181 = vmatpush1.msra.mxu0 0.0
    %182 = vmatprep.subr.mxu0 0.0
    %183 = vmatpush1.msra.mxu0 0.0
    %184 = vmatprep.subr.mxu0 0.0
    %185 = vmatpush1.msra.mxu0 0.0
    %186 = vmatprep.subr.mxu0 0.0
    %187 = vmatpush1.msra.mxu0 0.0
    %188 = vmatprep.mubr.f32.mxu0 0.0
    %189 = vmatmul.mubr.f32.gmra.mrb[0].mxu0 %v50
    %v190 = vpop.f32.mrb[0].mxu0
    %v191 = vadd.f32 0.0, %v190
    %v192 = vpop.f32.mrb[0].mxu0
    %193 = vmatprep.mubr.f32.mxu0 0.0
    %194 = vmatmul.mubr.f32.gmra.mrb[0].mxu0 %v53
    %v195 = vpop.f32.mrb[0].mxu0
    %v196 = vadd.f32 0.0, %v195
    %v197 = vpop.f32.mrb[0].mxu0
    %198 = vmatprep.mubr.f32.mxu0 0.0
    %199 = vmatmul.mubr.f32.gmra.mrb[0].mxu0 %v56
    %v200 = vpop.f32.mrb[0].mxu0
    %v201 = vadd.f32 0.0, %v200
    %v202 = vpop.f32.mrb[0].mxu0
    %203 = vmatprep.mubr.f32.mxu0 0.0
    %204 = vmatmul.mubr.f32.gmra.mrb[0].mxu0 %v59
    %v205 = vpop.f32.mrb[0].mxu0
    %v206 = vadd.f32 0.0, %v205
    %v207 = vpop.f32.mrb[0].mxu0
    %208 = vmatprep.mubr.f32.mxu0 0.0
    %209 = vmatmul.mubr.f32.gmra.mrb[0].mxu0 %v62
    %v210 = vpop.f32.mrb[0].mxu0
    %v211 = vadd.f32 0.0, %v210
    %v212 = vpop.f32.mrb[0].mxu0
    %213 = vmatprep.mubr.f32.mxu0 0.0
    %214 = vmatmul.mubr.f32.gmra.mrb[0].mxu0 %v65
    %v215 = vpop.f32.mrb[0].mxu0
    %v216 = vadd.f32 0.0, %v215
    %v217 = vpop.f32.mrb[0].mxu0
    %218 = vmatprep.mubr.f32.mxu0 0.0
    %219 = vmatmul.mubr.f32.gmra.mrb[0].mxu0 %v68
    %v220 = vpop.f32.mrb[0].mxu0
    %v221 = vadd.f32 0.0, %v220
    %v222 = vpop.f32.mrb[0].mxu0
    %223 = vmatprep.mubr.f32.mxu0 0.0
    %224 = vmatmul.mubr.f32.gmra.mrb[0].mxu0 %v71
    %v225 = vpop.f32.mrb[0].mxu0
    %v226 = vadd.f32 0.0, %v225
    %v227 = vpop.f32.mrb[0].mxu0
    %228 = vmatprep.mubr.f32.mxu0 0.0
    %229 = vmatmul.mubr.f32.gmra.mrb[0].mxu0 %v74
    %v230 = vpop.f32.mrb[0].mxu0
    %v231 = vadd.f32 0.0, %v230
    %v232 = vpop.f32.mrb[0].mxu0
    %233 = vmatprep.mubr.f32.mxu0 0.0
    %234 = vmatmul.mubr.f32.gmra.mrb[0].mxu0 %v77
    %v235 = vpop.f32.mrb[0].mxu0
    %v236 = vadd.f32 0.0, %v235
    %v237 = vpop.f32.mrb[0].mxu0
    %238 = vmatprep.mubr.f32.mxu0 0.0
    %239 = vmatmul.mubr.f32.gmra.mrb[0].mxu0 %v80
    %v240 = vpop.f32.mrb[0].mxu0
    %v241 = vadd.f32 0.0, %v240
    %v242 = vpop.f32.mrb[0].mxu0
    %243 = vmatprep.mubr.f32.mxu0 0.0
    %244 = vmatmul.mubr.f32.gmra.mrb[0].mxu0 %v83
    %v245 = vpop.f32.mrb[0].mxu0
    %v246 = vadd.f32 0.0, %v245
    %v247 = vpop.f32.mrb[0].mxu0
    %248 = vmatprep.mubr.f32.mxu0 0.0
    %249 = vmatmul.mubr.f32.gmra.mrb[0].mxu0 %v86
    %v250 = vpop.f32.mrb[0].mxu0
    %v251 = vadd.f32 0.0, %v250
    %v252 = vpop.f32.mrb[0].mxu0
    %253 = vmatprep.mubr.f32.mxu0 0.0
    %254 = vmatmul.mubr.f32.gmra.mrb[0].mxu0 %v89
    %v255 = vpop.f32.mrb[0].mxu0
    %v256 = vadd.f32 0.0, %v255
    %v257 = vpop.f32.mrb[0].mxu0
    %258 = vmatprep.mubr.f32.mxu0 0.0
    %259 = vmatmul.mubr.f32.gmra.mrb[0].mxu0 %v92
    %v260 = vpop.f32.mrb[0].mxu0
    %v261 = vadd.f32 0.0, %v260
    %v262 = vpop.f32.mrb[0].mxu0
    %263 = vmatprep.mubr.f32.mxu0 0.0
    %264 = vmatmul.mubr.f32.gmra.mrb[0].mxu0 %v95
    %v265 = vpop.f32.mrb[0].mxu0
    %v266 = vadd.f32 0.0, %v265
    %v267 = vpop.f32.mrb[0].mxu0
    %268 = vmatprep.mubr.f32.mxu0 0.0
    %269 = vmatmul.mubr.f32.gmra.mrb[0].mxu0 %v98
    %v270 = vpop.f32.mrb[0].mxu0
    %v271 = vadd.f32 0.0, %v270
    %v272 = vpop.f32.mrb[0].mxu0
    %273 = vmatprep.mubr.f32.mxu0 0.0
    %274 = vmatmul.mubr.f32.gmra.mrb[0].mxu0 %v101
    %v275 = vpop.f32.mrb[0].mxu0
    %v276 = vadd.f32 0.0, %v275
    %v277 = vpop.f32.mrb[0].mxu0
    %278 = vmatprep.mubr.f32.mxu0 0.0
    %279 = vmatmul.mubr.f32.gmra.mrb[0].mxu0 %v104
    %v280 = vpop.f32.mrb[0].mxu0
    %v281 = vadd.f32 0.0, %v280
    %v282 = vpop.f32.mrb[0].mxu0
    %283 = vmatprep.mubr.f32.mxu0 0.0
    %284 = vmatmul.mubr.f32.gmra.mrb[0].mxu0 %v107
    %v285 = vpop.f32.mrb[0].mxu0
    %v286 = vadd.f32 0.0, %v285
    %v287 = vpop.f32.mrb[0].mxu0
    %288 = vmatprep.mubr.f32.mxu0 0.0
    %289 = vmatmul.mubr.f32.gmra.mrb[0].mxu0 %v110
    %v290 = vpop.f32.mrb[0].mxu0
    %v291 = vadd.f32 0.0, %v290
    %v292 = vpop.f32.mrb[0].mxu0
    %293 = vmatprep.mubr.f32.mxu0 0.0
    %294 = vmatmul.mubr.f32.gmra.mrb[0].mxu0 %v113
    %v295 = vpop.f32.mrb[0].mxu0
    %v296 = vadd.f32 0.0, %v295
    %v297 = vpop.f32.mrb[0].mxu0
    %298 = vmatprep.mubr.f32.mxu0 0.0
    %299 = vmatmul.mubr.f32.gmra.mrb[0].mxu0 %v116
    %v300 = vpop.f32.mrb[0].mxu0
    %v301 = vadd.f32 0.0, %v300
    %v302 = vpop.f32.mrb[0].mxu0
    %303 = vmatprep.mubr.f32.mxu0 0.0
    %304 = vmatmul.mubr.f32.gmra.mrb[0].mxu0 %v119
    %v305 = vpop.f32.mrb[0].mxu0
    %v306 = vadd.f32 0.0, %v305
    %v307 = vpop.f32.mrb[0].mxu0
    %308 = vmatprep.mubr.f32.mxu0 0.0
    %309 = vmatmul.mubr.f32.gmra.mrb[0].mxu0 %v122
    %v310 = vpop.f32.mrb[0].mxu0
    %v311 = vadd.f32 0.0, %v310
    %v312 = vpop.f32.mrb[0].mxu0
    %313 = vdwg.mxu0
    %vm314 = vcmask 64512
    %315 = vst.msk [vmem:[#allocation2] sm:$0xff] %vm314, %v191
    %316 = vst.msk [vmem:[#allocation2 + $0x8] sm:$0xff] %vm314, %v196
    %317 = vst.msk [vmem:[#allocation2 + $0x10] sm:$0xff] %vm314, %v201
    %318 = vst.msk [vmem:[#allocation2 + $0x18] sm:$0xff] %vm314, %v206
    %319 = vst.msk [vmem:[#allocation2 + $0x20] sm:$0xff] %vm314, %v211
    %320 = vst.msk [vmem:[#allocation2 + $0x28] sm:$0xff] %vm314, %v216
    %321 = vst.msk [vmem:[#allocation2 + $0x30] sm:$0xff] %vm314, %v221
    %322 = vst.msk [vmem:[#allocation2 + $0x38] sm:$0xff] %vm314, %v226
    %323 = vst.msk [vmem:[#allocation2 + $0x40] sm:$0xff] %vm314, %v231
    %324 = vst.msk [vmem:[#allocation2 + $0x48] sm:$0xff] %vm314, %v236
    %325 = vst.msk [vmem:[#allocation2 + $0x50] sm:$0xff] %vm314, %v241
    %326 = vst.msk [vmem:[#allocation2 + $0x58] sm:$0xff] %vm314, %v246
    %327 = vst.msk [vmem:[#allocation2 + $0x60] sm:$0xff] %vm314, %v251
    %328 = vst.msk [vmem:[#allocation2 + $0x68] sm:$0xff] %vm314, %v256
    %329 = vst.msk [vmem:[#allocation2 + $0x70] sm:$0xff] %vm314, %v261
    %330 = vst.msk [vmem:[#allocation2 + $0x78] sm:$0xff] %vm314, %v266
    %331 = vst.msk [vmem:[#allocation2 + $0x80] sm:$0xff] %vm314, %v271
    %332 = vst.msk [vmem:[#allocation2 + $0x88] sm:$0xff] %vm314, %v276
    %333 = vst.msk [vmem:[#allocation2 + $0x90] sm:$0xff] %vm314, %v281
    %334 = vst.msk [vmem:[#allocation2 + $0x98] sm:$0xff] %vm314, %v286
    %335 = vst.msk [vmem:[#allocation2 + $0xa0] sm:$0xff] %vm314, %v291
    %336 = vst.msk [vmem:[#allocation2 + $0xa8] sm:$0xff] %vm314, %v296
    %337 = vst.msk [vmem:[#allocation2 + $0xb0] sm:$0xff] %vm314, %v301
    %338 = vst.msk [vmem:[#allocation2 + $0xb8] sm:$0xff] %vm314, %v306
    %339 = vst.msk [vmem:[#allocation2 + $0xc0] sm:$0xff] %vm314, %v311
    %v340 = vld [vmem:[%s2] sm:$0x1]
    %v341 = vld [vmem:[#allocation2 + $0xc0] sm:$0x1]
    %v342 = vsub.f32 %v340, %v341
    %vm343 = vcmask 57344
    %344 = vst.msk [vmem:[#allocation3] sm:$0x1] %vm343, %v342
    %v345 = vld [vmem:[%s0] sm:$0xff]
    %v346 = vld [vmem:[%s0 + $0x8] sm:$0xff]
    %v347 = vld [vmem:[%s0 + $0x10] sm:$0xff]
    %v348 = vld [vmem:[%s0 + $0x18] sm:$0xff]
    %v349 = vld [vmem:[#allocation2] sm:$0xff]
    %v350 = vld [vmem:[#allocation2 + $0x8] sm:$0xff]
    %v351 = vld [vmem:[#allocation2 + $0x10] sm:$0xff]
    %v352 = vld [vmem:[#allocation2 + $0x18] sm:$0xff]
    %v353 = vld [vmem:[#allocation2 + $0x20] sm:$0xff]
    %v354 = vld [vmem:[#allocation2 + $0x28] sm:$0xff]
    %v355 = vld [vmem:[#allocation2 + $0x30] sm:$0xff]
    %v356 = vld [vmem:[#allocation2 + $0x38] sm:$0xff]
    %v357 = vmul.f32 %v349, 1.442695
    %v358 = vpow.pop %v357
    %v359 = vmul.f32 %v350, 1.442695
    %v360 = vpow.pop %v359
    %v361 = vmul.f32 %v351, 1.442695
    %v362 = vpow.pop %v361
    %v363 = vmul.f32 %v352, 1.442695
    %v364 = vpow.pop %v363
    %v365 = vmul.f32 %v345, %v358
    %v366 = vmul.f32 %v346, %v360
    %v367 = vmul.f32 %v347, %v362
    %v368 = vmul.f32 %v348, %v364
    %v369 = vadd.f32 %v365, %v353
    %v370 = vadd.f32 %v366, %v354
    %v371 = vadd.f32 %v367, %v355
    %v372 = vadd.f32 %v368, %v356
    %v373 = vld [vmem:[#allocation2 + $0x40] sm:$0xff]
    %v374 = vld [vmem:[#allocation2 + $0x48] sm:$0xff]
    %v375 = vld [vmem:[#allocation2 + $0x50] sm:$0xff]
    %v376 = vld [vmem:[#allocation2 + $0x58] sm:$0xff]
    %v377 = vld [vmem:[#allocation2 + $0x60] sm:$0xff]
    %v378 = vld [vmem:[#allocation2 + $0x68] sm:$0xff]
    %v379 = vld [vmem:[#allocation2 + $0x70] sm:$0xff]
    %v380 = vld [vmem:[#allocation2 + $0x78] sm:$0xff]
    %v381 = vmul.f32 %v373, 1.442695
    %v382 = vpow.pop %v381
    %v383 = vmul.f32 %v374, 1.442695
    %v384 = vpow.pop %v383
    %v385 = vmul.f32 %v375, 1.442695
    %v386 = vpow.pop %v385
    %v387 = vmul.f32 %v376, 1.442695
    %v388 = vpow.pop %v387
    %v389 = vmul.f32 %v369, %v382
    %v390 = vmul.f32 %v370, %v384
    %v391 = vmul.f32 %v371, %v386
    %v392 = vmul.f32 %v372, %v388
    %v393 = vadd.f32 %v389, %v377
    %v394 = vadd.f32 %v390, %v378
    %v395 = vadd.f32 %v391, %v379
    %v396 = vadd.f32 %v392, %v380
    %v397 = vld [vmem:[#allocation2 + $0x80] sm:$0xff]
    %v398 = vld [vmem:[#allocation2 + $0x88] sm:$0xff]
    %v399 = vld [vmem:[#allocation2 + $0x90] sm:$0xff]
    %v400 = vld [vmem:[#allocation2 + $0x98] sm:$0xff]
    %v401 = vld [vmem:[#allocation2 + $0xa0] sm:$0xff]
    %v402 = vld [vmem:[#allocation2 + $0xa8] sm:$0xff]
    %v403 = vld [vmem:[#allocation2 + $0xb0] sm:$0xff]
    %v404 = vld [vmem:[#allocation2 + $0xb8] sm:$0xff]
    %v405 = vmul.f32 %v397, 1.442695
    %v406 = vpow.pop %v405
    %v407 = vmul.f32 %v398, 1.442695
    %v408 = vpow.pop %v407
    %v409 = vmul.f32 %v399, 1.442695
    %v410 = vpow.pop %v409
    %v411 = vmul.f32 %v400, 1.442695
    %v412 = vpow.pop %v411
    %v413 = vmul.f32 %v393, %v406
    %v414 = vmul.f32 %v394, %v408
    %v415 = vmul.f32 %v395, %v410
    %v416 = vmul.f32 %v396, %v412
    %v417 = vadd.f32 %v413, %v401
    %v418 = vadd.f32 %v414, %v402
    %v419 = vadd.f32 %v415, %v403
    %v420 = vadd.f32 %v416, %v404
    %421 = vst.msk [vmem:[%s4] sm:$0xff] %vm314, %v417
    %422 = vst.msk [vmem:[%s4 + $0x8] sm:$0xff] %vm314, %v418
    %423 = vst.msk [vmem:[%s4 + $0x10] sm:$0xff] %vm314, %v419
    %424 = vst.msk [vmem:[%s4 + $0x18] sm:$0xff] %vm314, %v420
    // Predicated region
    $region18: #{tpu_custom_call.1} parent=1 // pred_check
      _
    $region19: #{tpu_custom_call.1} parent=1 // pred_check_branch
      %426 = sbr.rel (0) target = $region21
    $region20: #{tpu_custom_call.1} parent=1 // pred_region
      _
    $region21: #{tpu_custom_call.1} parent=1 // pred_fallthru
      _
    // Predicated region
    $region22: #{tpu_custom_call.1} parent=1 // pred_check
      _
    $region23: #{tpu_custom_call.1} parent=1 // pred_check_branch
      %428 = sbr.rel (0) target = $region25
    $region24: #{tpu_custom_call.1} parent=1 // pred_region
      %s430 = ssub.s32 16, 16
      %431 = vsyncadd [#allocation4], %s430
      %s433 = sshll.u32 [#allocation3], 4
      %s434 = int_to_ptr.vmem [resolvable:$true] %s433
      %436 = dma.vmem_to_hbm [thread:$0]  %s434, 16, %s5, [#allocation4]
    $region25: #{tpu_custom_call.1} parent=1 // pred_fallthru
      _
    // Predicated region
    $region26: #{tpu_custom_call.1} parent=1 // pred_check
      _
    $region27: #{tpu_custom_call.1} parent=1 // pred_check_branch
      %438 = sbr.rel (0) target = $region29
    $region28: #{tpu_custom_call.1} parent=1 // pred_region
      _
    $region29: #{tpu_custom_call.1} parent=1 // pred_fallthru
      _
    // Predicated region
    $region30: #{tpu_custom_call.1} parent=1 // pred_check
      _
    $region31: #{tpu_custom_call.1} parent=1 // pred_check_branch
      %440 = sbr.rel (0) target = $region33
    $region32: #{tpu_custom_call.1} parent=1 // pred_region
      %441 = dma.done [#allocation4], 16
    $region33: #{tpu_custom_call.1} parent=1 // pred_fallthru
      _
    %442 = vsyncpa [#allocation4], 1

// kernel: tpu_custom_call.1
$region0: #{tpu_custom_call.1}
  #allocation0 [shape = 'u32[]', space=smem, size = 0x4, offset = 0x4, fixed_abs, tag = 'smem constant byte address 0x4 - core index']
  #allocation1 [shape = 'u32[144,128]{1,0:T(1,128)}', space=vmem, size = 0x12000, scoped, tag = 'internal scratch']
  #allocation2 [shape = 'f32[200,8]{1,0:T(8,128)}', space=vmem, size = 0x19000, scoped, tag = 'scratch operand']
  %s0 = inlined_call_operand.vmem [shape: f32[32,8], index: 0, kind: input, shape index: {}]
  %s1 = inlined_call_operand.vmem [shape: f32[24,8], index: 1, kind: input, shape index: {}]
  %s2 = inlined_call_operand.vmem [shape: f32[1,8], index: 2, kind: input, shape index: {}]
  %s3 = inlined_call_operand.vmem [shape: f32[200,24], index: 3, kind: input, shape index: {}]
  %s4 = inlined_call_operand.vmem [shape: f32[32,8], index: 4, kind: output, shape index: {0}]
  %s5 = inlined_call_operand.hbm [shape: f32[1,8], index: 5, kind: output, shape index: {1}]
  %6 = xla_tuple %s4, %s5
  %s7 = sld [smem:[#allocation0]]
  $region34: #{tpu_custom_call.1} parent=0
    _
  %s9 = ssub.s32 1, %s7
  %s10 = scalar_select 0, %s9, %s7
  $region1: #{tpu_custom_call.1} parent=0
    #allocation3 [shape = 'u8[512]{0}', space=vmem, size = 0x400, scoped, tag = 'output window, operand 1, single buffered']
    #allocation4 [shape = 's32[1]{0}', space=sflag, size = 0x4, scoped, tag = 'scoped memory for tpu_custom_call.1']
    %11 = vsyncpa [#allocation4], 0
    // Predicated region
    $region2: #{tpu_custom_call.1} parent=1 // pred_check
      _
    $region3: #{tpu_custom_call.1} parent=1 // pred_check_branch
      %13 = sbr.rel (0) target = $region5
    $region4: #{tpu_custom_call.1} parent=1 // pred_region
      _
    $region5: #{tpu_custom_call.1} parent=1 // pred_fallthru
      _
    // Predicated region
    $region6: #{tpu_custom_call.1} parent=1 // pred_check
      _
    $region7: #{tpu_custom_call.1} parent=1 // pred_check_branch
      %15 = sbr.rel (0) target = $region9
    $region8: #{tpu_custom_call.1} parent=1 // pred_region
      _
    $region9: #{tpu_custom_call.1} parent=1 // pred_fallthru
      _
    // Predicated region
    $region10: #{tpu_custom_call.1} parent=1 // pred_check
      _
    $region11: #{tpu_custom_call.1} parent=1 // pred_check_branch
      %17 = sbr.rel (0) target = $region13
    $region12: #{tpu_custom_call.1} parent=1 // pred_region
      _
    $region13: #{tpu_custom_call.1} parent=1 // pred_fallthru
      _
    // Predicated region
    $region14: #{tpu_custom_call.1} parent=1 // pred_check
      _
    $region15: #{tpu_custom_call.1} parent=1 // pred_check_branch
      %19 = sbr.rel (0) target = $region17
    $region16: #{tpu_custom_call.1} parent=1 // pred_region
      _
    $region17: #{tpu_custom_call.1} parent=1 // pred_fallthru
      _
    %v20 = vld [vmem:[%s3] sm:$0xff]
    %v21 = vld [vmem:[%s3 + $0x8] sm:$0xff]
    %v22 = vld [vmem:[%s3 + $0x10] sm:$0xff]
    %v23 = vld [vmem:[%s3 + $0x18] sm:$0xff]
    %v24 = vld [vmem:[%s3 + $0x20] sm:$0xff]
    %v25 = vld [vmem:[%s3 + $0x28] sm:$0xff]
    %v26 = vld [vmem:[%s3 + $0x30] sm:$0xff]
    %v27 = vld [vmem:[%s3 + $0x38] sm:$0xff]
    %v28 = vld [vmem:[%s3 + $0x40] sm:$0xff]
    %v29 = vld [vmem:[%s3 + $0x48] sm:$0xff]
    %v30 = vld [vmem:[%s3 + $0x50] sm:$0xff]
    %v31 = vld [vmem:[%s3 + $0x58] sm:$0xff]
    %v32 = vld [vmem:[%s3 + $0x60] sm:$0xff]
    %v33 = vld [vmem:[%s3 + $0x68] sm:$0xff]
    %v34 = vld [vmem:[%s3 + $0x70] sm:$0xff]
    %v35 = vld [vmem:[%s3 + $0x78] sm:$0xff]
    %v36 = vld [vmem:[%s3 + $0x80] sm:$0xff]
    %v37 = vld [vmem:[%s3 + $0x88] sm:$0xff]
    %v38 = vld [vmem:[%s3 + $0x90] sm:$0xff]
    %v39 = vld [vmem:[%s3 + $0x98] sm:$0xff]
    %v40 = vld [vmem:[%s3 + $0xa0] sm:$0xff]
    %v41 = vld [vmem:[%s3 + $0xa8] sm:$0xff]
    %v42 = vld [vmem:[%s3 + $0xb0] sm:$0xff]
    %v43 = vld [vmem:[%s3 + $0xb8] sm:$0xff]
    %v44 = vld [vmem:[%s3 + $0xc0] sm:$0xff]
    %v45 = vld [vmem:[%s1] sm:$0xff]
    %v46 = vld [vmem:[%s1 + $0x8] sm:$0xff]
    %v47 = vld [vmem:[%s1 + $0x10] sm:$0xff]
    %vm48 = vcmask 195584
    %v50 = vsel %vm48, %v20, 0
    %v53 = vsel %vm48, %v21, 0
    %v56 = vsel %vm48, %v22, 0
    %v59 = vsel %vm48, %v23, 0
    %v62 = vsel %vm48, %v24, 0
    %v65 = vsel %vm48, %v25, 0
    %v68 = vsel %vm48, %v26, 0
    %v71 = vsel %vm48, %v27, 0
    %v74 = vsel %vm48, %v28, 0
    %v77 = vsel %vm48, %v29, 0
    %v80 = vsel %vm48, %v30, 0
    %v83 = vsel %vm48, %v31, 0
    %v86 = vsel %vm48, %v32, 0
    %v89 = vsel %vm48, %v33, 0
    %v92 = vsel %vm48, %v34, 0
    %v95 = vsel %vm48, %v35, 0
    %v98 = vsel %vm48, %v36, 0
    %v101 = vsel %vm48, %v37, 0
    %v104 = vsel %vm48, %v38, 0
    %v107 = vsel %vm48, %v39, 0
    %v110 = vsel %vm48, %v40, 0
    %v113 = vsel %vm48, %v41, 0
    %v116 = vsel %vm48, %v42, 0
    %v119 = vsel %vm48, %v43, 0
    %v122 = vsel %vm48, %v44, 0
    %124 = vmatprep.subr.mxu0 0.0
    %125 = vmatpush1.msra.mxu0 %v45
    %126 = vmatprep.subr.mxu0 0.0
    %127 = vmatpush1.msra.mxu0 %v46
    %128 = vmatprep.subr.mxu0 0.0
    %129 = vmatpush1.msra.mxu0 %v47
    %130 = vmatprep.subr.mxu0 0.0
    %131 = vmatpush1.msra.mxu0 0.0
    %132 = vmatprep.subr.mxu0 0.0
    %133 = vmatpush1.msra.mxu0 0.0
    %134 = vmatprep.subr.mxu0 0.0
    %135 = vmatpush1.msra.mxu0 0.0
    %136 = vmatprep.subr.mxu0 0.0
    %137 = vmatpush1.msra.mxu0 0.0
    %138 = vmatprep.subr.mxu0 0.0
    %139 = vmatpush1.msra.mxu0 0.0
    %140 = vmatprep.subr.mxu0 0.0
    %141 = vmatpush1.msra.mxu0 0.0
    %142 = vmatprep.subr.mxu0 0.0
    %143 = vmatpush1.msra.mxu0 0.0
    %144 = vmatprep.subr.mxu0 0.0
    %145 = vmatpush1.msra.mxu0 0.0
    %146 = vmatprep.subr.mxu0 0.0
    %147 = vmatpush1.msra.mxu0 0.0
    %148 = vmatprep.subr.mxu0 0.0
    %149 = vmatpush1.msra.mxu0 0.0
    %150 = vmatprep.subr.mxu0 0.0
    %151 = vmatpush1.msra.mxu0 0.0
    %152 = vmatprep.subr.mxu0 0.0
    %153 = vmatpush1.msra.mxu0 0.0
    %154 = vmatprep.subr.mxu0 0.0
    %155 = vmatpush1.msra.mxu0 0.0
    %156 = vmatprep.subr.mxu0 0.0
    %157 = vmatpush1.msra.mxu0 0.0
    %158 = vmatprep.subr.mxu0 0.0
    %159 = vmatpush1.msra.mxu0 0.0
    %160 = vmatprep.subr.mxu0 0.0
    %161 = vmatpush1.msra.mxu0 0.0
    %162 = vmatprep.subr.mxu0 0.0
    %163 = vmatpush1.msra.mxu0 0.0
    %164 = vmatprep.subr.mxu0 0.0
    %165 = vmatpush1.msra.mxu0 0.0
    %166 = vmatprep.subr.mxu0 0.0
    %167 = vmatpush1.msra.mxu0 0.0
    %168 = vmatprep.subr.mxu0 0.0
    %169 = vmatpush1.msra.mxu0 0.0
    %170 = vmatprep.subr.mxu0 0.0
    %171 = vmatpush1.msra.mxu0 0.0
    %172 = vmatprep.subr.mxu0 0.0
    %173 = vmatpush1.msra.mxu0 0.0
    %174 = vmatprep.subr.mxu0 0.0
    %175 = vmatpush1.msra.mxu0 0.0
    %176 = vmatprep.subr.mxu0 0.0
    %177 = vmatpush1.msra.mxu0 0.0
    %178 = vmatprep.subr.mxu0 0.0
    %179 = vmatpush1.msra.mxu0 0.0
    %180 = vmatprep.subr.mxu0 0.0
    %181 = vmatpush1.msra.mxu0 0.0
    %182 = vmatprep.subr.mxu0 0.0
    %183 = vmatpush1.msra.mxu0 0.0
    %184 = vmatprep.subr.mxu0 0.0
    %185 = vmatpush1.msra.mxu0 0.0
    %186 = vmatprep.subr.mxu0 0.0
    %187 = vmatpush1.msra.mxu0 0.0
    %188 = vmatprep.mubr.f32.mxu0 0.0
    %189 = vmatmul.mubr.f32.gmra.mrb[0].mxu0 %v50
    %v190 = vpop.f32.mrb[0].mxu0
    %v191 = vadd.f32 0.0, %v190
    %v192 = vpop.f32.mrb[0].mxu0
    %193 = vmatprep.mubr.f32.mxu0 0.0
    %194 = vmatmul.mubr.f32.gmra.mrb[0].mxu0 %v53
    %v195 = vpop.f32.mrb[0].mxu0
    %v196 = vadd.f32 0.0, %v195
    %v197 = vpop.f32.mrb[0].mxu0
    %198 = vmatprep.mubr.f32.mxu0 0.0
    %199 = vmatmul.mubr.f32.gmra.mrb[0].mxu0 %v56
    %v200 = vpop.f32.mrb[0].mxu0
    %v201 = vadd.f32 0.0, %v200
    %v202 = vpop.f32.mrb[0].mxu0
    %203 = vmatprep.mubr.f32.mxu0 0.0
    %204 = vmatmul.mubr.f32.gmra.mrb[0].mxu0 %v59
    %v205 = vpop.f32.mrb[0].mxu0
    %v206 = vadd.f32 0.0, %v205
    %v207 = vpop.f32.mrb[0].mxu0
    %208 = vmatprep.mubr.f32.mxu0 0.0
    %209 = vmatmul.mubr.f32.gmra.mrb[0].mxu0 %v62
    %v210 = vpop.f32.mrb[0].mxu0
    %v211 = vadd.f32 0.0, %v210
    %v212 = vpop.f32.mrb[0].mxu0
    %213 = vmatprep.mubr.f32.mxu0 0.0
    %214 = vmatmul.mubr.f32.gmra.mrb[0].mxu0 %v65
    %v215 = vpop.f32.mrb[0].mxu0
    %v216 = vadd.f32 0.0, %v215
    %v217 = vpop.f32.mrb[0].mxu0
    %218 = vmatprep.mubr.f32.mxu0 0.0
    %219 = vmatmul.mubr.f32.gmra.mrb[0].mxu0 %v68
    %v220 = vpop.f32.mrb[0].mxu0
    %v221 = vadd.f32 0.0, %v220
    %v222 = vpop.f32.mrb[0].mxu0
    %223 = vmatprep.mubr.f32.mxu0 0.0
    %224 = vmatmul.mubr.f32.gmra.mrb[0].mxu0 %v71
    %v225 = vpop.f32.mrb[0].mxu0
    %v226 = vadd.f32 0.0, %v225
    %v227 = vpop.f32.mrb[0].mxu0
    %228 = vmatprep.mubr.f32.mxu0 0.0
    %229 = vmatmul.mubr.f32.gmra.mrb[0].mxu0 %v74
    %v230 = vpop.f32.mrb[0].mxu0
    %v231 = vadd.f32 0.0, %v230
    %v232 = vpop.f32.mrb[0].mxu0
    %233 = vmatprep.mubr.f32.mxu0 0.0
    %234 = vmatmul.mubr.f32.gmra.mrb[0].mxu0 %v77
    %v235 = vpop.f32.mrb[0].mxu0
    %v236 = vadd.f32 0.0, %v235
    %v237 = vpop.f32.mrb[0].mxu0
    %238 = vmatprep.mubr.f32.mxu0 0.0
    %239 = vmatmul.mubr.f32.gmra.mrb[0].mxu0 %v80
    %v240 = vpop.f32.mrb[0].mxu0
    %v241 = vadd.f32 0.0, %v240
    %v242 = vpop.f32.mrb[0].mxu0
    %243 = vmatprep.mubr.f32.mxu0 0.0
    %244 = vmatmul.mubr.f32.gmra.mrb[0].mxu0 %v83
    %v245 = vpop.f32.mrb[0].mxu0
    %v246 = vadd.f32 0.0, %v245
    %v247 = vpop.f32.mrb[0].mxu0
    %248 = vmatprep.mubr.f32.mxu0 0.0
    %249 = vmatmul.mubr.f32.gmra.mrb[0].mxu0 %v86
    %v250 = vpop.f32.mrb[0].mxu0
    %v251 = vadd.f32 0.0, %v250
    %v252 = vpop.f32.mrb[0].mxu0
    %253 = vmatprep.mubr.f32.mxu0 0.0
    %254 = vmatmul.mubr.f32.gmra.mrb[0].mxu0 %v89
    %v255 = vpop.f32.mrb[0].mxu0
    %v256 = vadd.f32 0.0, %v255
    %v257 = vpop.f32.mrb[0].mxu0
    %258 = vmatprep.mubr.f32.mxu0 0.0
    %259 = vmatmul.mubr.f32.gmra.mrb[0].mxu0 %v92
    %v260 = vpop.f32.mrb[0].mxu0
    %v261 = vadd.f32 0.0, %v260
    %v262 = vpop.f32.mrb[0].mxu0
    %263 = vmatprep.mubr.f32.mxu0 0.0
    %264 = vmatmul.mubr.f32.gmra.mrb[0].mxu0 %v95
    %v265 = vpop.f32.mrb[0].mxu0
    %v266 = vadd.f32 0.0, %v265
    %v267 = vpop.f32.mrb[0].mxu0
    %268 = vmatprep.mubr.f32.mxu0 0.0
    %269 = vmatmul.mubr.f32.gmra.mrb[0].mxu0 %v98
    %v270 = vpop.f32.mrb[0].mxu0
    %v271 = vadd.f32 0.0, %v270
    %v272 = vpop.f32.mrb[0].mxu0
    %273 = vmatprep.mubr.f32.mxu0 0.0
    %274 = vmatmul.mubr.f32.gmra.mrb[0].mxu0 %v101
    %v275 = vpop.f32.mrb[0].mxu0
    %v276 = vadd.f32 0.0, %v275
    %v277 = vpop.f32.mrb[0].mxu0
    %278 = vmatprep.mubr.f32.mxu0 0.0
    %279 = vmatmul.mubr.f32.gmra.mrb[0].mxu0 %v104
    %v280 = vpop.f32.mrb[0].mxu0
    %v281 = vadd.f32 0.0, %v280
    %v282 = vpop.f32.mrb[0].mxu0
    %283 = vmatprep.mubr.f32.mxu0 0.0
    %284 = vmatmul.mubr.f32.gmra.mrb[0].mxu0 %v107
    %v285 = vpop.f32.mrb[0].mxu0
    %v286 = vadd.f32 0.0, %v285
    %v287 = vpop.f32.mrb[0].mxu0
    %288 = vmatprep.mubr.f32.mxu0 0.0
    %289 = vmatmul.mubr.f32.gmra.mrb[0].mxu0 %v110
    %v290 = vpop.f32.mrb[0].mxu0
    %v291 = vadd.f32 0.0, %v290
    %v292 = vpop.f32.mrb[0].mxu0
    %293 = vmatprep.mubr.f32.mxu0 0.0
    %294 = vmatmul.mubr.f32.gmra.mrb[0].mxu0 %v113
    %v295 = vpop.f32.mrb[0].mxu0
    %v296 = vadd.f32 0.0, %v295
    %v297 = vpop.f32.mrb[0].mxu0
    %298 = vmatprep.mubr.f32.mxu0 0.0
    %299 = vmatmul.mubr.f32.gmra.mrb[0].mxu0 %v116
    %v300 = vpop.f32.mrb[0].mxu0
    %v301 = vadd.f32 0.0, %v300
    %v302 = vpop.f32.mrb[0].mxu0
    %303 = vmatprep.mubr.f32.mxu0 0.0
    %304 = vmatmul.mubr.f32.gmra.mrb[0].mxu0 %v119
    %v305 = vpop.f32.mrb[0].mxu0
    %v306 = vadd.f32 0.0, %v305
    %v307 = vpop.f32.mrb[0].mxu0
    %308 = vmatprep.mubr.f32.mxu0 0.0
    %309 = vmatmul.mubr.f32.gmra.mrb[0].mxu0 %v122
    %v310 = vpop.f32.mrb[0].mxu0
    %v311 = vadd.f32 0.0, %v310
    %v312 = vpop.f32.mrb[0].mxu0
    %313 = vdwg.mxu0
    %vm314 = vcmask 64512
    %315 = vst.msk [vmem:[#allocation2] sm:$0xff] %vm314, %v191
    %316 = vst.msk [vmem:[#allocation2 + $0x8] sm:$0xff] %vm314, %v196
    %317 = vst.msk [vmem:[#allocation2 + $0x10] sm:$0xff] %vm314, %v201
    %318 = vst.msk [vmem:[#allocation2 + $0x18] sm:$0xff] %vm314, %v206
    %319 = vst.msk [vmem:[#allocation2 + $0x20] sm:$0xff] %vm314, %v211
    %320 = vst.msk [vmem:[#allocation2 + $0x28] sm:$0xff] %vm314, %v216
    %321 = vst.msk [vmem:[#allocation2 + $0x30] sm:$0xff] %vm314, %v221
    %322 = vst.msk [vmem:[#allocation2 + $0x38] sm:$0xff] %vm314, %v226
    %323 = vst.msk [vmem:[#allocation2 + $0x40] sm:$0xff] %vm314, %v231
    %324 = vst.msk [vmem:[#allocation2 + $0x48] sm:$0xff] %vm314, %v236
    %325 = vst.msk [vmem:[#allocation2 + $0x50] sm:$0xff] %vm314, %v241
    %326 = vst.msk [vmem:[#allocation2 + $0x58] sm:$0xff] %vm314, %v246
    %327 = vst.msk [vmem:[#allocation2 + $0x60] sm:$0xff] %vm314, %v251
    %328 = vst.msk [vmem:[#allocation2 + $0x68] sm:$0xff] %vm314, %v256
    %329 = vst.msk [vmem:[#allocation2 + $0x70] sm:$0xff] %vm314, %v261
    %330 = vst.msk [vmem:[#allocation2 + $0x78] sm:$0xff] %vm314, %v266
    %331 = vst.msk [vmem:[#allocation2 + $0x80] sm:$0xff] %vm314, %v271
    %332 = vst.msk [vmem:[#allocation2 + $0x88] sm:$0xff] %vm314, %v276
    %333 = vst.msk [vmem:[#allocation2 + $0x90] sm:$0xff] %vm314, %v281
    %334 = vst.msk [vmem:[#allocation2 + $0x98] sm:$0xff] %vm314, %v286
    %335 = vst.msk [vmem:[#allocation2 + $0xa0] sm:$0xff] %vm314, %v291
    %336 = vst.msk [vmem:[#allocation2 + $0xa8] sm:$0xff] %vm314, %v296
    %337 = vst.msk [vmem:[#allocation2 + $0xb0] sm:$0xff] %vm314, %v301
    %338 = vst.msk [vmem:[#allocation2 + $0xb8] sm:$0xff] %vm314, %v306
    %339 = vst.msk [vmem:[#allocation2 + $0xc0] sm:$0xff] %vm314, %v311
    %v340 = vld [vmem:[%s2] sm:$0x1]
    %v341 = vld [vmem:[#allocation2 + $0xc0] sm:$0x1]
    %v342 = vsub.f32 %v340, %v341
    %vm343 = vcmask 57344
    %344 = vst.msk [vmem:[#allocation3] sm:$0x1] %vm343, %v342
    %v345 = vld [vmem:[%s0] sm:$0xff]
    %v346 = vld [vmem:[%s0 + $0x8] sm:$0xff]
    %v347 = vld [vmem:[%s0 + $0x10] sm:$0xff]
    %v348 = vld [vmem:[%s0 + $0x18] sm:$0xff]
    %v349 = vld [vmem:[#allocation2] sm:$0xff]
    %v350 = vld [vmem:[#allocation2 + $0x8] sm:$0xff]
    %v351 = vld [vmem:[#allocation2 + $0x10] sm:$0xff]
    %v352 = vld [vmem:[#allocation2 + $0x18] sm:$0xff]
    %v353 = vld [vmem:[#allocation2 + $0x20] sm:$0xff]
    %v354 = vld [vmem:[#allocation2 + $0x28] sm:$0xff]
    %v355 = vld [vmem:[#allocation2 + $0x30] sm:$0xff]
    %v356 = vld [vmem:[#allocation2 + $0x38] sm:$0xff]
    %v357 = vmul.f32 %v349, 1.442695
    %v358 = vpow.pop %v357
    %v359 = vmul.f32 %v350, 1.442695
    %v360 = vpow.pop %v359
    %v361 = vmul.f32 %v351, 1.442695
    %v362 = vpow.pop %v361
    %v363 = vmul.f32 %v352, 1.442695
    %v364 = vpow.pop %v363
    %v365 = vmul.f32 %v345, %v358
    %v366 = vmul.f32 %v346, %v360
    %v367 = vmul.f32 %v347, %v362
    %v368 = vmul.f32 %v348, %v364
    %v369 = vadd.f32 %v365, %v353
    %v370 = vadd.f32 %v366, %v354
    %v371 = vadd.f32 %v367, %v355
    %v372 = vadd.f32 %v368, %v356
    %v373 = vld [vmem:[#allocation2 + $0x40] sm:$0xff]
    %v374 = vld [vmem:[#allocation2 + $0x48] sm:$0xff]
    %v375 = vld [vmem:[#allocation2 + $0x50] sm:$0xff]
    %v376 = vld [vmem:[#allocation2 + $0x58] sm:$0xff]
    %v377 = vld [vmem:[#allocation2 + $0x60] sm:$0xff]
    %v378 = vld [vmem:[#allocation2 + $0x68] sm:$0xff]
    %v379 = vld [vmem:[#allocation2 + $0x70] sm:$0xff]
    %v380 = vld [vmem:[#allocation2 + $0x78] sm:$0xff]
    %v381 = vmul.f32 %v373, 1.442695
    %v382 = vpow.pop %v381
    %v383 = vmul.f32 %v374, 1.442695
    %v384 = vpow.pop %v383
    %v385 = vmul.f32 %v375, 1.442695
    %v386 = vpow.pop %v385
    %v387 = vmul.f32 %v376, 1.442695
    %v388 = vpow.pop %v387
    %v389 = vmul.f32 %v369, %v382
    %v390 = vmul.f32 %v370, %v384
    %v391 = vmul.f32 %v371, %v386
    %v392 = vmul.f32 %v372, %v388
    %v393 = vadd.f32 %v389, %v377
    %v394 = vadd.f32 %v390, %v378
    %v395 = vadd.f32 %v391, %v379
    %v396 = vadd.f32 %v392, %v380
    %v397 = vld [vmem:[#allocation2 + $0x80] sm:$0xff]
    %v398 = vld [vmem:[#allocation2 + $0x88] sm:$0xff]
    %v399 = vld [vmem:[#allocation2 + $0x90] sm:$0xff]
    %v400 = vld [vmem:[#allocation2 + $0x98] sm:$0xff]
    %v401 = vld [vmem:[#allocation2 + $0xa0] sm:$0xff]
    %v402 = vld [vmem:[#allocation2 + $0xa8] sm:$0xff]
    %v403 = vld [vmem:[#allocation2 + $0xb0] sm:$0xff]
    %v404 = vld [vmem:[#allocation2 + $0xb8] sm:$0xff]
    %v405 = vmul.f32 %v397, 1.442695
    %v406 = vpow.pop %v405
    %v407 = vmul.f32 %v398, 1.442695
    %v408 = vpow.pop %v407
    %v409 = vmul.f32 %v399, 1.442695
    %v410 = vpow.pop %v409
    %v411 = vmul.f32 %v400, 1.442695
    %v412 = vpow.pop %v411
    %v413 = vmul.f32 %v393, %v406
    %v414 = vmul.f32 %v394, %v408
    %v415 = vmul.f32 %v395, %v410
    %v416 = vmul.f32 %v396, %v412
    %v417 = vadd.f32 %v413, %v401
    %v418 = vadd.f32 %v414, %v402
    %v419 = vadd.f32 %v415, %v403
    %v420 = vadd.f32 %v416, %v404
    %421 = vst.msk [vmem:[%s4] sm:$0xff] %vm314, %v417
    %422 = vst.msk [vmem:[%s4 + $0x8] sm:$0xff] %vm314, %v418
    %423 = vst.msk [vmem:[%s4 + $0x10] sm:$0xff] %vm314, %v419
    %424 = vst.msk [vmem:[%s4 + $0x18] sm:$0xff] %vm314, %v420
    // Predicated region
    $region18: #{tpu_custom_call.1} parent=1 // pred_check
      _
    $region19: #{tpu_custom_call.1} parent=1 // pred_check_branch
      %426 = sbr.rel (0) target = $region21
    $region20: #{tpu_custom_call.1} parent=1 // pred_region
      _
    $region21: #{tpu_custom_call.1} parent=1 // pred_fallthru
      _
    // Predicated region
    $region22: #{tpu_custom_call.1} parent=1 // pred_check
      _
    $region23: #{tpu_custom_call.1} parent=1 // pred_check_branch
      %428 = sbr.rel (0) target = $region25
    $region24: #{tpu_custom_call.1} parent=1 // pred_region
      %s430 = ssub.s32 16, 16
      %431 = vsyncadd [#allocation4], %s430
      %s433 = sshll.u32 [#allocation3], 4
      %s434 = int_to_ptr.vmem [resolvable:$true] %s433
      %436 = dma.vmem_to_hbm [thread:$0]  %s434, 16, %s5, [#allocation4]
    $region25: #{tpu_custom_call.1} parent=1 // pred_fallthru
      _
    // Predicated region
    $region26: #{tpu_custom_call.1} parent=1 // pred_check
      _
    $region27: #{tpu_custom_call.1} parent=1 // pred_check_branch
      %438 = sbr.rel (0) target = $region29
    $region28: #{tpu_custom_call.1} parent=1 // pred_region
      _
    $region29: #{tpu_custom_call.1} parent=1 // pred_fallthru
      _
    // Predicated region
    $region30: #{tpu_custom_call.1} parent=1 // pred_check
      _
    $region31: #{tpu_custom_call.1} parent=1 // pred_check_branch
      %440 = sbr.rel (0) target = $region33
    $region32: #{tpu_custom_call.1} parent=1 // pred_region
      %441 = dma.done [#allocation4], 16
    $region33: #{tpu_custom_call.1} parent=1 // pred_fallthru
      _
    %442 = vsyncpa [#allocation4], 1

</llo_original>
